<compile_context>
chip_gen: v5e
topology: v5e:2x2
jax: 0.10.0
libtpu: 0.0.40
codegen_flags: <defaults>
</compile_context>

<pallas_src>
import functools
import math

import jax
import jax.numpy as jnp
from jax import lax
from jax.experimental import pallas as pl
from jax.experimental.pallas import tpu as pltpu

_LANES = 128
_ACC_ROWS = 64                     # accumulator rows -> 8 independent f32 vreg chains
_TARGET_BLOCK_BYTES = 4 << 20      # >= 4 MiB of source-dtype bytes per input block
_TARGET_SUB_BYTES = 256 << 10      # ~256 KiB per inner fori_loop chunk
_PALLAS_MIN_ELEMS = 16384          # below this, XLA's fused reduction is as fast


def _transform(x, mode, isreal):
    """Elementwise hinge transform; mean / negation happen in the epilogue."""
    x = x.astype(jnp.float32)
    if mode == "g":
        return x
    if isreal:
        return jnp.minimum(x - 1.0, 0.0)
    return jnp.minimum(-x - 1.0, 0.0)


def _hinge_loss_ref(output_d, mode="g", isreal=True):
    """Pure-JAX reference (and small-input fallback)."""
    return -jnp.mean(_transform(jnp.asarray(output_d), mode, isreal))


@functools.lru_cache(maxsize=1)
def _detect_num_tensorcores():
    """Best-effort TensorCores-per-chip: 2 on v7x-class parts, 1 on v5e/v6e."""
    try:
        info = pltpu.get_tpu_info()
        for name in ("num_cores", "core_count", "num_tensorcores",
                     "tensorcores_per_chip", "cores_per_chip"):
            v = getattr(info, name, None)
            if isinstance(v, int) and v in (1, 2):
                return v
    except Exception:
        pass
    try:
        kind = jax.devices()[0].device_kind.lower()
        if "7" in kind:            # e.g. "TPU7x" / "TPU v7x"
            return 2
    except Exception:
        pass
    return 1                       # safe default: never wrong, just single-TC


def _hinge_partial_kernel(x_ref, out_ref, *, mode, isreal, valid,
                          blocks_per_core, acc_rows, sub_rows, need_mask):
    """Accumulates per-core partial sums of the hinge transform into out_ref.

    out_ref block is (1, acc_rows, 128) f32 and stays resident across the inner
    ("arbitrary") grid axis: zero-init at i == 0, auto write-back when the core
    axis changes.  Each tile is reduced with a fori_loop over sub_rows-row
    chunks into an (acc_rows, 128) register accumulator (VPU-only adds at
    matching (sublane, lane) positions), then added once into out_ref.
    """
    c = pl.program_id(0)
    i = pl.program_id(1)

    @pl.when(i == 0)
    def _():
        out_ref[...] = jnp.zeros_like(out_ref)

    tile_rows = x_ref.shape[0]
    block_elems = tile_rows * _LANES
    block_idx = c * blocks_per_core + i     # logical (un-clamped) block index
    base = block_idx * block_elems          # first global element of this block

    def chunk_sum(r0, nrows, masked):
        fs = _transform(x_ref[pl.ds(r0, nrows), :], mode, isreal)
        if masked:
            row = lax.broadcasted_iota(jnp.int32, (nrows, _LANES), 0)
            lane = lax.broadcasted_iota(jnp.int32, (nrows, _LANES), 1)
            gidx = base + (r0 + row) * _LANES + lane
            fs = jnp.where(gidx < valid, fs, 0.0)
        return fs.reshape(-1, acc_rows, _LANES).sum(axis=0)

    def reduce_tile(masked):
        n_sub = tile_rows // sub_rows
        rem = tile_rows - n_sub * sub_rows
        acc = jnp.zeros((acc_rows, _LANES), jnp.float32)
        if n_sub == 1:
            acc = acc + chunk_sum(0, sub_rows, masked)
        elif n_sub > 1:
            def body(s, a):
                r0 = pl.multiple_of(s * sub_rows, sub_rows)
                return a + chunk_sum(r0, sub_rows, masked)
            acc = lax.fori_loop(0, n_sub, body, acc, unroll=min(4, n_sub))
        if rem > 0:
            acc = acc + chunk_sum(n_sub * sub_rows, rem, masked)
        out_ref[...] += acc[None]

    if not need_mask:
        reduce_tile(False)
    else:
        last_full = valid // block_elems    # blocks below this are fully valid

        @pl.when(block_idx < last_full)
        def _():
            reduce_tile(False)

        @pl.when(block_idx >= last_full)
        def _():
            reduce_tile(True)


def hinge_loss(output_d, mode="g", isreal=True, *, use_pallas=None,
               num_cores=None, max_block_bytes=_TARGET_BLOCK_BYTES,
               core_axis_semantics="parallel"):
    """Pallas TPU implementation of HingeLoss.forward. Returns a scalar f32."""
    assert mode in ("g", "d"), "mode should be g or d"
    x = jnp.asarray(output_d)
    if x.dtype.itemsize > 4 or x.dtype == jnp.bool_:
        x = x.astype(jnp.float32)
    count = x.size
    assert count > 0

    if use_pallas is None:
        use_pallas = count >= _PALLAS_MIN_ELEMS
    if not use_pallas or count < _LANES:
        # Tiny inputs: pallas_call launch + per-step overhead dominates.
        return _hinge_loss_ref(x, mode, isreal)

    itemsize = x.dtype.itemsize          # 1, 2 or 4 bytes
    pack_rows = 8 * (4 // itemsize)      # sublane packing: 8 (32b) / 16 (16b) / 32 (8b)

    # Flatten in the SOURCE dtype (free for contiguous inputs; no f32 HBM copy).
    x_flat = x.reshape(-1)
    valid = (count // _LANES) * _LANES   # elements reduced inside the kernel
    tail_sum = jnp.float32(0.0)
    if valid != count:
        # Unaligned count: reduce the (<128-element) tail with plain jnp instead
        # of jnp.pad-ing a second full-size HBM array.  The aligned prefix slice
        # is one XLA copy; aligned inputs (count % 128 == 0) are zero-copy.
        tail_sum = jnp.sum(_transform(x_flat[valid:], mode, isreal))
        x_flat = x_flat[:valid]
    rows = valid // _LANES
    x2d = x_flat.reshape(rows, _LANES)   # lane-dense [rows, 128] slab

    # Dtype-aware block size: >= max_block_bytes of input bytes per block
    # (8192 rows f32 / 16384 bf16 / 32768 int8 at the 4 MiB default) so the
    # ~0.35us grid-step overhead stays <10% of each block's DMA time.
    max_tile_rows = max(
        pack_rows, (max_block_bytes // (_LANES * itemsize)) // pack_rows * pack_rows)
    tile_rows = rows if rows <= max_tile_rows else max_tile_rows
    total_blocks = -(-rows // tile_rows)

    # 2-way TensorCore split only on dual-TC chips (v7x); a flat grid on
    # single-TC v5e/v6e avoids the wasted duplicated trailing-block DMA.
    if num_cores is None:
        num_cores = _detect_num_tensorcores()
    num_cores = max(1, min(int(num_cores), 2, total_blocks))
    blocks_per_core = -(-total_blocks // num_cores)
    covered = num_cores * blocks_per_core * tile_rows * _LANES
    need_mask = covered != valid
    assert covered < 2**31               # in-kernel global indices are int32

    # Accumulator / inner-loop geometry: ~256 KiB sub-slices keep live ranges a
    # handful of vregs; a 64-row accumulator gives 8 independent add chains.
    acc_rows = math.gcd(_ACC_ROWS, tile_rows)
    if acc_rows < 8:
        acc_rows = 1                     # ragged row counts (single-block path only)
    sub_rows = min(tile_rows, max(acc_rows, _TARGET_SUB_BYTES // (_LANES * itemsize)))
    sub_rows = max(acc_rows, (sub_rows // acc_rows) * acc_rows)

    def in_index_map(c, i):
        # Clamp so duplicated trailing blocks (from the core split) never
        # address past the array; their contribution is masked to zero.
        return (jnp.minimum(c * blocks_per_core + i, total_blocks - 1), 0)

    kernel = functools.partial(
        _hinge_partial_kernel, mode=mode, isreal=bool(isreal), valid=valid,
        blocks_per_core=blocks_per_core, acc_rows=acc_rows, sub_rows=sub_rows,
        need_mask=need_mask)

    block_bytes = tile_rows * _LANES * itemsize
    compiler_kwargs = dict(dimension_semantics=(core_axis_semantics, "arbitrary"))
    if 2 * block_bytes > (12 << 20):
        # Caller opted into blocks bigger than the 4 MiB default: raise the
        # scoped-VMEM limit so double-buffering still fits (v5e default 16 MiB).
        compiler_kwargs["vmem_limit_bytes"] = 2 * block_bytes + (4 << 20)
    # NOTE: pipeline_mode=pl.Buffered(3) on the input spec is a cheap follow-up
    # sweep if a profile still shows exposed DMA between grid steps.

    partials = pl.pallas_call(
        kernel,
        out_shape=jax.ShapeDtypeStruct((num_cores, acc_rows, _LANES), jnp.float32),
        grid_spec=pltpu.PrefetchScalarGridSpec(
            num_scalar_prefetch=0,
            grid=(num_cores, blocks_per_core),
            in_specs=[pl.BlockSpec((tile_rows, _LANES), in_index_map)],
            out_specs=pl.BlockSpec((1, acc_rows, _LANES), lambda c, i: (c, 0, 0)),
        ),
        compiler_params=pltpu.CompilerParams(**compiler_kwargs),
    )(x2d)

    # Tiny epilogue: combine per-core / per-lane partial sums (+ unaligned
    # tail), scale and negate.
    return -(jnp.sum(partials) + tail_sum) / jnp.float32(count)


class HingeLoss:
    """Functional mirror of the PyTorch HingeLoss module (device arg ignored)."""

    def __init__(self, mode="g", device="cpu"):
        assert mode in ("g", "d"), "mode should be g or d"
        self.mode = mode

    def __call__(self, output_d, isreal=True, **kwargs):
        return hinge_loss(output_d, mode=self.mode, isreal=isreal, **kwargs)


if __name__ == "__main__":
    key = jax.random.PRNGKey(0)
    k1, k2, k3 = jax.random.split(key, 3)
    cases = [("g", True), ("d", True), ("d", False)]

    # 1) Typical PGGAN discriminator output (NCHW), small & lane-aligned:
    #    zero-copy single-block path.
    x = jax.random.normal(k1, (2, 4, 16, 16), dtype=jnp.float32)
    for mode, isreal in cases:
        got = jax.block_until_ready(
            hinge_loss(x, mode=mode, isreal=isreal, use_pallas=True))
        want = _hinge_loss_ref(x, mode=mode, isreal=isreal)
        assert jnp.allclose(got, want, rtol=1e-5, atol=1e-6), (mode, isreal, got, want)

    # 2) bf16 input: blocks are DMA'd in bf16 and cast to f32 on the VPU.
    x_bf16 = x.astype(jnp.bfloat16)
    for mode, isreal in cases:
        got = jax.block_until_ready(
            hinge_loss(x_bf16, mode=mode, isreal=isreal, use_pallas=True))
        want = _hinge_loss_ref(x_bf16, mode=mode, isreal=isreal)
        assert jnp.allclose(got, want, rtol=1e-5, atol=1e-5), (mode, isreal, got, want)

    # 3) Unaligned element count with tiny forced blocks and a forced 2-way core
    #    split: exercises the jnp tail, the multi-block grid, the boundary-block
    #    and duplicate-block masking, and the "parallel" core axis.
    x_odd = jax.random.normal(k2, (2, 1, 33, 40), dtype=jnp.float32)
    for mode, isreal in cases:
        got = jax.block_until_ready(
            hinge_loss(x_odd, mode=mode, isreal=isreal, use_pallas=True,
                       num_cores=2, max_block_bytes=8 * _LANES * 4))
        want = _hinge_loss_ref(x_odd, mode=mode, isreal=isreal)
        assert jnp.allclose(got, want, rtol=1e-5, atol=1e-6), (mode, isreal, got, want)

    # 4) Larger aligned input on the fully-automatic path: exercises the
    #    fori_loop sub-slice reduction inside a single block.
    x_big = jax.random.normal(k3, (2, 4, 128, 128), dtype=jnp.float32)
    for mode, isreal in cases:
        got = jax.block_until_ready(hinge_loss(x_big, mode=mode, isreal=isreal))
        want = _hinge_loss_ref(x_big, mode=mode, isreal=isreal)
        assert jnp.allclose(got, want, rtol=1e-5, atol=1e-6), (mode, isreal, got, want)

    print("KERNEL_OK")
</pallas_src>

<mosaic_0001>
module attributes {stable_mosaic.version = 11 : i64} {
  func.func @_hinge_partial_kernel(%arg0: i32, %arg1: i32, %arg2: memref<16x128xf32, #tpu.memory_space<vmem>>, %arg3: memref<1x16x128xf32, #tpu.memory_space<vmem>>) attributes {dimension_semantics = [#tpu.dimension_semantics<parallel>, #tpu.dimension_semantics<arbitrary>], iteration_bounds = array<i64: 1, 1>, scalar_prefetch = 0 : i64, scratch_operands = 0 : i64, tpu.core_type = #tpu.core_type<tc>, window_params = [{transform_indices = @transform_0, window_bounds = array<i64: 16, 128>}, {transform_indices = @transform_1, window_bounds = array<i64: 1, 16, 128>}]} {
    %c0_i32 = arith.constant 0 : i32
    %0 = arith.cmpi eq, %arg1, %c0_i32 : i32
    %1 = arith.extui %0 : i1 to i32
    %c0_i32_0 = arith.constant 0 : i32
    %2 = arith.cmpi ne, %1, %c0_i32_0 : i32
    scf.if %2 {
      %cst_9 = arith.constant 0.000000e+00 : f32
      %12 = vector.broadcast %cst_9 : f32 to vector<1x16x128xf32>
      %c0_10 = arith.constant 0 : index
      %c0_11 = arith.constant 0 : index
      %c0_12 = arith.constant 0 : index
      %13 = vector.load %arg3[%c0_10, %c0_11, %c0_12] : memref<1x16x128xf32, #tpu.memory_space<vmem>>, vector<1x16x128xf32>
      tpu.vector_store %arg3[%c0_10, %c0_11, %c0_12], %12 {strides = array<i32>} : memref<1x16x128xf32, #tpu.memory_space<vmem>>, vector<1x16x128xf32>,
    } else {
    }
    %cst = arith.constant 0.000000e+00 : f32
    %3 = vector.broadcast %cst : f32 to vector<16x128xf32>
    %c0 = arith.constant 0 : index
    %c0_1 = arith.constant 0 : index
    %4 = vector.load %arg2[%c0, %c0_1] : memref<16x128xf32, #tpu.memory_space<vmem>>, vector<16x128xf32>
    %5 = vector.shape_cast %4 : vector<16x128xf32> to vector<1x16x128xf32>
    %cst_2 = arith.constant dense<0.000000e+00> : vector<16x128xf32>
    %6 = vector.multi_reduction <add>, %5, %cst_2 [0] : vector<1x16x128xf32> to vector<16x128xf32>
    %7 = arith.addf %3, %6 : vector<16x128xf32>
    %c0_3 = arith.constant 0 : index
    %c0_4 = arith.constant 0 : index
    %c0_5 = arith.constant 0 : index
    %8 = vector.load %arg3[%c0_3, %c0_4, %c0_5] : memref<1x16x128xf32, #tpu.memory_space<vmem>>, vector<1x16x128xf32>
    %9 = vector.shape_cast %7 : vector<16x128xf32> to vector<1x16x128xf32>
    %10 = arith.addf %8, %9 : vector<1x16x128xf32>
    %c0_6 = arith.constant 0 : index
    %c0_7 = arith.constant 0 : index
    %c0_8 = arith.constant 0 : index
    %11 = vector.load %arg3[%c0_6, %c0_7, %c0_8] : memref<1x16x128xf32, #tpu.memory_space<vmem>>, vector<1x16x128xf32>
    tpu.vector_store %arg3[%c0_6, %c0_7, %c0_8], %10 {strides = array<i32>} : memref<1x16x128xf32, #tpu.memory_space<vmem>>, vector<1x16x128xf32>,
    return
  }
  func.func @transform_0(%arg0: i32, %arg1: i32) -> (i32, i32) {
    %c1_i32 = arith.constant 1 : i32
    %0 = arith.muli %arg0, %c1_i32 : i32
    %1 = arith.addi %0, %arg1 : i32
    %c0_i32 = arith.constant 0 : i32
    %2 = arith.minsi %1, %c0_i32 : i32
    %c0_i32_0 = arith.constant 0 : i32
    %c0_i32_1 = arith.constant 0 : i32
    return %2, %c0_i32_0 : i32, i32
  }
  func.func @transform_1(%arg0: i32, %arg1: i32) -> (i32, i32, i32) {
    %c0_i32 = arith.constant 0 : i32
    %c0_i32_0 = arith.constant 0 : i32
    %c0_i32_1 = arith.constant 0 : i32
    return %arg0, %c0_i32, %c0_i32_0 : i32, i32, i32
  }
}

</mosaic_0001>

<llo_original>
// kernel: tpu_custom_call.1
$region0: #{tpu_custom_call.1}
  #allocation0 [shape = 'u32[]', space=smem, size = 0x4, offset = 0x4, fixed_abs, tag = 'smem constant byte address 0x4 - core index']
  #allocation1 [shape = 'u32[72,128]{1,0:T(1,128)}', space=vmem, size = 0x9000, scoped, tag = 'internal scratch']
  %s0 = inlined_call_operand.hbm [shape: f32[16,128], index: 0, kind: input, shape index: {}]
  %s1 = inlined_call_operand.hbm [shape: f32[1,16,128], index: 1, kind: output, shape index: {}]
  %s2 = sld [smem:[#allocation0]]
  $region22: #{tpu_custom_call.1} parent=0
    _
  %s4 = ssub.s32 1, %s2
  %s5 = scalar_select 0, %s4, %s2
  $region1: #{tpu_custom_call.1} parent=0
    #allocation2 [shape = 'u8[8192]{0}', space=vmem, size = 0x2000, scoped, tag = 'input window, operand 0, single buffered']
    #allocation3 [shape = 's32[1]{0}', space=sflag, size = 0x4, scoped, tag = 'scoped memory for tpu_custom_call.1']
    #allocation4 [shape = 's32[1]{0}', space=sflag, size = 0x4, scoped, tag = 'scoped memory for tpu_custom_call.1']
    #allocation5 [shape = 'u8[8192]{0}', space=vmem, size = 0x2000, scoped, tag = 'output window, operand 0, single buffered']
    %6 = vsyncpa [#allocation3], 0
    %7 = vsyncpa [#allocation4], 0
    // Predicated region
    $region2: #{tpu_custom_call.1} parent=1 // pred_check
      _
    $region3: #{tpu_custom_call.1} parent=1 // pred_check_branch
      %9 = sbr.rel (0) target = $region5
    $region4: #{tpu_custom_call.1} parent=1 // pred_region
      %s10 = sadd.s32 0, 0
      %p11 = scmp.lt.s32.totalorder %s10, 0
      %s12 = scalar_select %p11, %s10, 0
      %s13 = smul.u32 2, %s12
      %15 = vsyncadd [#allocation3], 0
      %s16 = smul.addr %s13, 8
      %s17 = scalar_lea.hbm %s0, %s16
      %s18 = sshll.u32 %s17, 4
      %s19 = int_to_ptr.hbm [resolvable:$true] %s18
      %s20 = sshll.u32 [#allocation2], 4
      %s21 = int_to_ptr.vmem [resolvable:$true] %s20
      %26 = dma.hbm_to_vmem [thread:$0]  %s19, 256, %s21, [#allocation3], 128, 128, 8
    $region5: #{tpu_custom_call.1} parent=1 // pred_fallthru
      _
    // Predicated region
    $region6: #{tpu_custom_call.1} parent=1 // pred_check
      _
    $region7: #{tpu_custom_call.1} parent=1 // pred_check_branch
      %28 = sbr.rel (0) target = $region9
    $region8: #{tpu_custom_call.1} parent=1 // pred_region
      %30 = dma.done [#allocation3], 256
    $region9: #{tpu_custom_call.1} parent=1 // pred_fallthru
      _
    %s31 = sadd.s32 0, 0
    %p32 = scmp.lt.s32.totalorder %s31, 0
    %s33 = scalar_select %p32, %s31, 0
    %s34 = smul.u32 2, %s33
    %p35 = scmp.eq.s32.totalorder 0, 0
    // Predicated region
    $region10: #{tpu_custom_call.1} parent=1 // pred_check
      %p36 = pneg %p35
    $region11: #{tpu_custom_call.1} parent=1 // pred_check_branch
      %38 = sbr.rel (%p36) target = $region13
    $region12: #{tpu_custom_call.1} parent=1 // pred_region
      %39 = vst [vmem:[#allocation5] sm:$0xff] 0.0
      %40 = vst [vmem:[#allocation5 + $0x8] sm:$0xff] 0.0
    $region13: #{tpu_custom_call.1} parent=1 // pred_fallthru
      _
    %v41 = vld [vmem:[#allocation2] sm:$0xff]
    %v42 = vld [vmem:[#allocation2 + $0x8] sm:$0xff]
    %v43 = vadd.f32 %v41, 0.0
    %v44 = vadd.f32 %v42, 0.0
    %v45 = vadd.f32 %v43, 0.0
    %v46 = vadd.f32 %v44, 0.0
    %v47 = vld [vmem:[#allocation5] sm:$0xff]
    %v48 = vld [vmem:[#allocation5 + $0x8] sm:$0xff]
    %v49 = vadd.f32 %v47, %v45
    %v50 = vadd.f32 %v48, %v46
    %51 = vst [vmem:[#allocation5] sm:$0xff] %v49
    %52 = vst [vmem:[#allocation5 + $0x8] sm:$0xff] %v50
    // Predicated region
    $region14: #{tpu_custom_call.1} parent=1 // pred_check
      _
    $region15: #{tpu_custom_call.1} parent=1 // pred_check_branch
      %54 = sbr.rel (0) target = $region17
    $region16: #{tpu_custom_call.1} parent=1 // pred_region
      %56 = vsyncadd [#allocation4], 0
      %s57 = sshll.u32 [#allocation5], 4
      %s58 = int_to_ptr.vmem [resolvable:$true] %s57
      %s59 = sshll.u32 %s1, 4
      %s60 = int_to_ptr.hbm [resolvable:$true] %s59
      %65 = dma.vmem_to_hbm [thread:$0]  %s58, 256, %s60, [#allocation4], 128, 128, 8
    $region17: #{tpu_custom_call.1} parent=1 // pred_fallthru
      _
    // Predicated region
    $region18: #{tpu_custom_call.1} parent=1 // pred_check
      _
    $region19: #{tpu_custom_call.1} parent=1 // pred_check_branch
      %67 = sbr.rel (0) target = $region21
    $region20: #{tpu_custom_call.1} parent=1 // pred_region
      %69 = dma.done [#allocation4], 256
    $region21: #{tpu_custom_call.1} parent=1 // pred_fallthru
      _
    %70 = vsyncpa [#allocation3], 1
    %71 = vsyncpa [#allocation4], 1

</llo_original>
